<compile_context>
chip_gen: v7x
topology: tpu7x:2x2x1
jax: 0.10.0
libtpu: 0.0.40
codegen_flags: <defaults>
</compile_context>

<pallas_src>
import math
import functools

import jax
import jax.numpy as jnp
from jax import lax
from jax.experimental import pallas as pl
from jax.experimental.pallas import tpu as pltpu


# ------------------------ conv path (use_conv=True) ------------------------ #

def _conv_row_kernel(w_ref, b_ref, r0_ref, r1_ref, r2_ref, o_ref, *, wo, cin):
    """One NHWC output row: contract all 9 taps of a 3x3/stride-2 conv.

    w_ref : (3, 3, Cin, tile_n)   weight tile (bf16)
    b_ref : (1, tile_n)           bias (f32)
    r*_ref: (Wp2, 2*Cin)          padded input rows 2r, 2r+1, 2r+2, with the
                                  W-parity folded into the lane axis
    o_ref : (Wo, tile_n)          NHWC output row tile
    """
    acc = jnp.zeros(o_ref.shape, jnp.float32)
    rows = (r0_ref, r1_ref, r2_ref)
    for kh in range(3):
        row = rows[kh]
        for kw in range(3):
            off, par = kw // 2, kw % 2
            # padded W index 2q+kw == row (q+off), parity `par`  -> static slice
            lhs = row[off:off + wo, par * cin:(par + 1) * cin]      # (Wo, Cin)
            acc = acc + jnp.dot(lhs, w_ref[kh, kw],
                                preferred_element_type=jnp.float32)
    o_ref[...] = (acc + b_ref[...]).astype(o_ref.dtype)


def conv_downsample_2d(x, w, b, *, compute_dtype=jnp.bfloat16, tile_n=256):
    """3x3 / stride-2 / pad-1 conv.  x: NCHW, w: OIHW, b: (Cout,) -> NCHW."""
    N, Cin, H, W = x.shape
    Cout = w.shape[0]
    Ho = (H + 2 - 3) // 2 + 1
    Wo = (W + 2 - 3) // 2 + 1

    Hp = H + 2
    Wp = W + 2
    w_extra = Wp % 2                      # extra (never-read) column if Wp odd
    Wp2 = (Wp + w_extra) // 2

    # NCHW -> NHWC, spatial pad, cast to bf16 for the MXU.
    x_nhwc = jnp.transpose(x, (0, 2, 3, 1)).astype(compute_dtype)
    xp = jnp.pad(x_nhwc, ((0, 0), (1, 1), (1, 1 + w_extra), (0, 0)))
    # Free view: fold W-parity into the lane axis -> stride-2 taps are static.
    xv = xp.reshape(N, Hp, Wp2, 2 * Cin)

    # OIHW -> (KH, KW, Cin, Cout)
    w_t = jnp.transpose(w, (2, 3, 1, 0)).astype(compute_dtype)
    b_row = b.reshape(1, Cout).astype(jnp.float32)

    tile_n = min(tile_n, Cout)
    n_j = pl.cdiv(Cout, tile_n)

    def row_spec(kh):
        return pl.BlockSpec(
            (None, None, Wp2, 2 * Cin),
            lambda n, r, j, kh=kh: (n, 2 * r + kh, 0, 0))

    kernel = functools.partial(_conv_row_kernel, wo=Wo, cin=Cin)

    out_nhwc = pl.pallas_call(
        kernel,
        out_shape=jax.ShapeDtypeStruct((N, Ho, Wo, Cout), jnp.float32),
        grid=(N, Ho, n_j),
        in_specs=[
            pl.BlockSpec((3, 3, Cin, tile_n), lambda n, r, j: (0, 0, 0, j)),
            pl.BlockSpec((1, tile_n), lambda n, r, j: (0, j)),
            row_spec(0), row_spec(1), row_spec(2),
        ],
        out_specs=pl.BlockSpec((None, None, Wo, tile_n),
                               lambda n, r, j: (n, r, 0, j)),
        compiler_params=pltpu.CompilerParams(
            dimension_semantics=("parallel", "parallel", "parallel")),
    )(w_t, b_row, xv, xv, xv)

    return jnp.transpose(out_nhwc, (0, 3, 1, 2)).astype(x.dtype)


# ---------------------- pooling path (use_conv=False) ---------------------- #

def _avgpool4_kernel(a_ref, b_ref, c_ref, d_ref, o_ref):
    o_ref[...] = 0.25 * (a_ref[...] + b_ref[...] + c_ref[...] + d_ref[...])


def avgpool_downsample_2d(x):
    """AvgPool2d(2, 2).  x: (N, C, H, W) -> (N, C, H//2, W//2).  NCHW in/out."""
    N, C, H, W = x.shape
    Ho, Wo = H // 2, W // 2
    x = x[:, :, :2 * Ho, :2 * Wo]                       # floor behavior
    x5 = x.reshape(N, C, Ho, 2, Wo, 2)
    corners = [x5[:, :, :, i, :, j] for i in (0, 1) for j in (0, 1)]

    T = N * C * Ho * Wo
    lane = 128 if T % 128 == 0 else Wo                  # lane-dense when possible
    rows = T // lane
    corners = [c.reshape(rows, lane) for c in corners]

    tile_r = rows if rows <= 4096 else 4096
    grid = (pl.cdiv(rows, tile_r),)

    out = pl.pallas_call(
        _avgpool4_kernel,
        out_shape=jax.ShapeDtypeStruct((rows, lane), x.dtype),
        grid=grid,
        in_specs=[pl.BlockSpec((tile_r, lane), lambda i: (i, 0))] * 4,
        out_specs=pl.BlockSpec((tile_r, lane), lambda i: (i, 0)),
        compiler_params=pltpu.CompilerParams(
            dimension_semantics=("parallel",)),
    )(*corners)

    return out.reshape(N, C, Ho, Wo)


# ------------------------------ module glue -------------------------------- #

def downsample_init(key, channels, use_conv, dims=2, out_channels=None,
                    dtype=jnp.float32):
    assert dims == 2, "only dims=2 implemented"
    out_channels = out_channels or channels
    params = {"channels": channels, "out_channels": out_channels,
              "use_conv": use_conv}
    if use_conv:
        fan_in = channels * 3 * 3
        bound = 1.0 / math.sqrt(fan_in)
        k1, k2 = jax.random.split(key)
        params["weight"] = jax.random.uniform(
            k1, (out_channels, channels, 3, 3), dtype, -bound, bound)  # OIHW
        params["bias"] = jax.random.uniform(
            k2, (out_channels,), dtype, -bound, bound)
    else:
        assert channels == out_channels
    return params


def downsample_forward(params, x_nchw):
    """Forward pass of Downsample (dims=2): (N, C, H, W) -> (N, Cout, Ho, Wo)."""
    assert x_nchw.shape[1] == params["channels"]
    if params["use_conv"]:
        return conv_downsample_2d(x_nchw, params["weight"], params["bias"])
    return avgpool_downsample_2d(x_nchw)


# -------------------------------- reference -------------------------------- #

def _ref_conv_bf16(params, x):
    # Same bf16 operand quantization as the kernel, f32 accumulation.
    xq = x.astype(jnp.bfloat16).astype(jnp.float32)
    wq = params["weight"].astype(jnp.bfloat16).astype(jnp.float32)
    y = lax.conv_general_dilated(
        xq, wq, window_strides=(2, 2), padding=[(1, 1), (1, 1)],
        dimension_numbers=("NCHW", "OIHW", "NCHW"),
        precision=lax.Precision.HIGHEST)
    return y + params["bias"][None, :, None, None]


# ----------------------------------- main ----------------------------------- #

if __name__ == "__main__":
    key = jax.random.PRNGKey(0)
    kx, kp = jax.random.split(key)

    N, C, H, W = 2, 4, 16, 16
    x = jax.random.normal(kx, (N, C, H, W), jnp.float32)

    # use_conv=True path (Conv2d 3x3, stride 2, pad 1)
    params_conv = downsample_init(kp, channels=C, use_conv=True, dims=2)
    y_conv = jax.block_until_ready(downsample_forward(params_conv, x))
    assert y_conv.shape == (N, C, H // 2, W // 2), y_conv.shape
    ref_conv = _ref_conv_bf16(params_conv, x)
    assert jnp.allclose(y_conv, ref_conv, atol=1e-3, rtol=1e-3), "conv mismatch"

    # use_conv=False path (AvgPool2d(2, 2))
    params_pool = downsample_init(kp, channels=C, use_conv=False, dims=2)
    y_pool = jax.block_until_ready(downsample_forward(params_pool, x))
    ref_pool = x.reshape(N, C, H // 2, 2, W // 2, 2).mean(axis=(3, 5))
    assert y_pool.shape == (N, C, H // 2, W // 2), y_pool.shape
    assert jnp.allclose(y_pool, ref_pool, atol=1e-5, rtol=1e-5), "pool mismatch"

    print("KERNEL_OK")
</pallas_src>

<mosaic_0001>
module attributes {stable_mosaic.version = 11 : i64} {
  func.func @_conv_row_kernel(%arg0: i32, %arg1: i32, %arg2: i32, %arg3: memref<3x3x4x4xbf16, #tpu.memory_space<vmem>>, %arg4: memref<1x4xf32, #tpu.memory_space<vmem>>, %arg5: memref<1x1x9x8xbf16, #tpu.memory_space<vmem>>, %arg6: memref<1x1x9x8xbf16, #tpu.memory_space<vmem>>, %arg7: memref<1x1x9x8xbf16, #tpu.memory_space<vmem>>, %arg8: memref<1x1x8x4xf32, #tpu.memory_space<vmem>>) attributes {dimension_semantics = [#tpu.dimension_semantics<parallel>, #tpu.dimension_semantics<parallel>, #tpu.dimension_semantics<parallel>], iteration_bounds = array<i64: 2, 8, 1>, scalar_prefetch = 0 : i64, scratch_operands = 0 : i64, tpu.core_type = #tpu.core_type<tc>, window_params = [{transform_indices = @transform_0, window_bounds = array<i64: 3, 3, 4, 4>}, {transform_indices = @transform_1, window_bounds = array<i64: 1, 4>}, {transform_indices = @transform_2, window_bounds = array<i64: 1, 1, 9, 8>}, {transform_indices = @transform_3, window_bounds = array<i64: 1, 1, 9, 8>}, {transform_indices = @transform_4, window_bounds = array<i64: 1, 1, 9, 8>}, {transform_indices = @transform_5, window_bounds = array<i64: 1, 1, 8, 4>}]} {
    %cst = arith.constant 0.000000e+00 : f32
    %0 = vector.broadcast %cst : f32 to vector<8x4xf32>
    %c0 = arith.constant 0 : index
    %c0_0 = arith.constant 0 : index
    %c0_1 = arith.constant 0 : index
    %c0_2 = arith.constant 0 : index
    %1 = vector.load %arg5[%c0, %c0_0, %c0_1, %c0_2] : memref<1x1x9x8xbf16, #tpu.memory_space<vmem>>, vector<1x1x8x4xbf16>
    %2 = vector.shape_cast %1 : vector<1x1x8x4xbf16> to vector<8x4xbf16>
    %c0_3 = arith.constant 0 : index
    %c0_4 = arith.constant 0 : index
    %c0_5 = arith.constant 0 : index
    %c0_6 = arith.constant 0 : index
    %3 = vector.load %arg3[%c0_3, %c0_4, %c0_5, %c0_6] : memref<3x3x4x4xbf16, #tpu.memory_space<vmem>>, vector<1x1x4x4xbf16>
    %4 = vector.shape_cast %3 : vector<1x1x4x4xbf16> to vector<4x4xbf16>
    %cst_7 = arith.constant dense<0.000000e+00> : vector<8x4xf32>
    %5 = tpu.matmul %2, %4, %cst_7 {dimension_numbers = #tpu.dot_dimension_numbers<[1], [0], [0], [1], [0, 0, 1, 1], [], []>} : vector<8x4xbf16>, vector<4x4xbf16>, vector<8x4xf32> -> vector<8x4xf32>
    %6 = arith.addf %0, %5 : vector<8x4xf32>
    %c0_8 = arith.constant 0 : index
    %c0_9 = arith.constant 0 : index
    %c0_10 = arith.constant 0 : index
    %c4 = arith.constant 4 : index
    %7 = vector.load %arg5[%c0_8, %c0_9, %c0_10, %c4] : memref<1x1x9x8xbf16, #tpu.memory_space<vmem>>, vector<1x1x8x4xbf16>
    %8 = vector.shape_cast %7 : vector<1x1x8x4xbf16> to vector<8x4xbf16>
    %c0_11 = arith.constant 0 : index
    %c1 = arith.constant 1 : index
    %c0_12 = arith.constant 0 : index
    %c0_13 = arith.constant 0 : index
    %9 = vector.load %arg3[%c0_11, %c1, %c0_12, %c0_13] : memref<3x3x4x4xbf16, #tpu.memory_space<vmem>>, vector<1x1x4x4xbf16>
    %10 = vector.shape_cast %9 : vector<1x1x4x4xbf16> to vector<4x4xbf16>
    %cst_14 = arith.constant dense<0.000000e+00> : vector<8x4xf32>
    %11 = tpu.matmul %8, %10, %cst_14 {dimension_numbers = #tpu.dot_dimension_numbers<[1], [0], [0], [1], [0, 0, 1, 1], [], []>} : vector<8x4xbf16>, vector<4x4xbf16>, vector<8x4xf32> -> vector<8x4xf32>
    %12 = arith.addf %6, %11 : vector<8x4xf32>
    %c0_15 = arith.constant 0 : index
    %c0_16 = arith.constant 0 : index
    %c1_17 = arith.constant 1 : index
    %c0_18 = arith.constant 0 : index
    %13 = vector.load %arg5[%c0_15, %c0_16, %c1_17, %c0_18] : memref<1x1x9x8xbf16, #tpu.memory_space<vmem>>, vector<1x1x8x4xbf16>
    %14 = vector.shape_cast %13 : vector<1x1x8x4xbf16> to vector<8x4xbf16>
    %c0_19 = arith.constant 0 : index
    %c2 = arith.constant 2 : index
    %c0_20 = arith.constant 0 : index
    %c0_21 = arith.constant 0 : index
    %15 = vector.load %arg3[%c0_19, %c2, %c0_20, %c0_21] : memref<3x3x4x4xbf16, #tpu.memory_space<vmem>>, vector<1x1x4x4xbf16>
    %16 = vector.shape_cast %15 : vector<1x1x4x4xbf16> to vector<4x4xbf16>
    %cst_22 = arith.constant dense<0.000000e+00> : vector<8x4xf32>
    %17 = tpu.matmul %14, %16, %cst_22 {dimension_numbers = #tpu.dot_dimension_numbers<[1], [0], [0], [1], [0, 0, 1, 1], [], []>} : vector<8x4xbf16>, vector<4x4xbf16>, vector<8x4xf32> -> vector<8x4xf32>
    %18 = arith.addf %12, %17 : vector<8x4xf32>
    %c0_23 = arith.constant 0 : index
    %c0_24 = arith.constant 0 : index
    %c0_25 = arith.constant 0 : index
    %c0_26 = arith.constant 0 : index
    %19 = vector.load %arg6[%c0_23, %c0_24, %c0_25, %c0_26] : memref<1x1x9x8xbf16, #tpu.memory_space<vmem>>, vector<1x1x8x4xbf16>
    %20 = vector.shape_cast %19 : vector<1x1x8x4xbf16> to vector<8x4xbf16>
    %c1_27 = arith.constant 1 : index
    %c0_28 = arith.constant 0 : index
    %c0_29 = arith.constant 0 : index
    %c0_30 = arith.constant 0 : index
    %21 = vector.load %arg3[%c1_27, %c0_28, %c0_29, %c0_30] : memref<3x3x4x4xbf16, #tpu.memory_space<vmem>>, vector<1x1x4x4xbf16>
    %22 = vector.shape_cast %21 : vector<1x1x4x4xbf16> to vector<4x4xbf16>
    %cst_31 = arith.constant dense<0.000000e+00> : vector<8x4xf32>
    %23 = tpu.matmul %20, %22, %cst_31 {dimension_numbers = #tpu.dot_dimension_numbers<[1], [0], [0], [1], [0, 0, 1, 1], [], []>} : vector<8x4xbf16>, vector<4x4xbf16>, vector<8x4xf32> -> vector<8x4xf32>
    %24 = arith.addf %18, %23 : vector<8x4xf32>
    %c0_32 = arith.constant 0 : index
    %c0_33 = arith.constant 0 : index
    %c0_34 = arith.constant 0 : index
    %c4_35 = arith.constant 4 : index
    %25 = vector.load %arg6[%c0_32, %c0_33, %c0_34, %c4_35] : memref<1x1x9x8xbf16, #tpu.memory_space<vmem>>, vector<1x1x8x4xbf16>
    %26 = vector.shape_cast %25 : vector<1x1x8x4xbf16> to vector<8x4xbf16>
    %c1_36 = arith.constant 1 : index
    %c1_37 = arith.constant 1 : index
    %c0_38 = arith.constant 0 : index
    %c0_39 = arith.constant 0 : index
    %27 = vector.load %arg3[%c1_36, %c1_37, %c0_38, %c0_39] : memref<3x3x4x4xbf16, #tpu.memory_space<vmem>>, vector<1x1x4x4xbf16>
    %28 = vector.shape_cast %27 : vector<1x1x4x4xbf16> to vector<4x4xbf16>
    %cst_40 = arith.constant dense<0.000000e+00> : vector<8x4xf32>
    %29 = tpu.matmul %26, %28, %cst_40 {dimension_numbers = #tpu.dot_dimension_numbers<[1], [0], [0], [1], [0, 0, 1, 1], [], []>} : vector<8x4xbf16>, vector<4x4xbf16>, vector<8x4xf32> -> vector<8x4xf32>
    %30 = arith.addf %24, %29 : vector<8x4xf32>
    %c0_41 = arith.constant 0 : index
    %c0_42 = arith.constant 0 : index
    %c1_43 = arith.constant 1 : index
    %c0_44 = arith.constant 0 : index
    %31 = vector.load %arg6[%c0_41, %c0_42, %c1_43, %c0_44] : memref<1x1x9x8xbf16, #tpu.memory_space<vmem>>, vector<1x1x8x4xbf16>
    %32 = vector.shape_cast %31 : vector<1x1x8x4xbf16> to vector<8x4xbf16>
    %c1_45 = arith.constant 1 : index
    %c2_46 = arith.constant 2 : index
    %c0_47 = arith.constant 0 : index
    %c0_48 = arith.constant 0 : index
    %33 = vector.load %arg3[%c1_45, %c2_46, %c0_47, %c0_48] : memref<3x3x4x4xbf16, #tpu.memory_space<vmem>>, vector<1x1x4x4xbf16>
    %34 = vector.shape_cast %33 : vector<1x1x4x4xbf16> to vector<4x4xbf16>
    %cst_49 = arith.constant dense<0.000000e+00> : vector<8x4xf32>
    %35 = tpu.matmul %32, %34, %cst_49 {dimension_numbers = #tpu.dot_dimension_numbers<[1], [0], [0], [1], [0, 0, 1, 1], [], []>} : vector<8x4xbf16>, vector<4x4xbf16>, vector<8x4xf32> -> vector<8x4xf32>
    %36 = arith.addf %30, %35 : vector<8x4xf32>
    %c0_50 = arith.constant 0 : index
    %c0_51 = arith.constant 0 : index
    %c0_52 = arith.constant 0 : index
    %c0_53 = arith.constant 0 : index
    %37 = vector.load %arg7[%c0_50, %c0_51, %c0_52, %c0_53] : memref<1x1x9x8xbf16, #tpu.memory_space<vmem>>, vector<1x1x8x4xbf16>
    %38 = vector.shape_cast %37 : vector<1x1x8x4xbf16> to vector<8x4xbf16>
    %c2_54 = arith.constant 2 : index
    %c0_55 = arith.constant 0 : index
    %c0_56 = arith.constant 0 : index
    %c0_57 = arith.constant 0 : index
    %39 = vector.load %arg3[%c2_54, %c0_55, %c0_56, %c0_57] : memref<3x3x4x4xbf16, #tpu.memory_space<vmem>>, vector<1x1x4x4xbf16>
    %40 = vector.shape_cast %39 : vector<1x1x4x4xbf16> to vector<4x4xbf16>
    %cst_58 = arith.constant dense<0.000000e+00> : vector<8x4xf32>
    %41 = tpu.matmul %38, %40, %cst_58 {dimension_numbers = #tpu.dot_dimension_numbers<[1], [0], [0], [1], [0, 0, 1, 1], [], []>} : vector<8x4xbf16>, vector<4x4xbf16>, vector<8x4xf32> -> vector<8x4xf32>
    %42 = arith.addf %36, %41 : vector<8x4xf32>
    %c0_59 = arith.constant 0 : index
    %c0_60 = arith.constant 0 : index
    %c0_61 = arith.constant 0 : index
    %c4_62 = arith.constant 4 : index
    %43 = vector.load %arg7[%c0_59, %c0_60, %c0_61, %c4_62] : memref<1x1x9x8xbf16, #tpu.memory_space<vmem>>, vector<1x1x8x4xbf16>
    %44 = vector.shape_cast %43 : vector<1x1x8x4xbf16> to vector<8x4xbf16>
    %c2_63 = arith.constant 2 : index
    %c1_64 = arith.constant 1 : index
    %c0_65 = arith.constant 0 : index
    %c0_66 = arith.constant 0 : index
    %45 = vector.load %arg3[%c2_63, %c1_64, %c0_65, %c0_66] : memref<3x3x4x4xbf16, #tpu.memory_space<vmem>>, vector<1x1x4x4xbf16>
    %46 = vector.shape_cast %45 : vector<1x1x4x4xbf16> to vector<4x4xbf16>
    %cst_67 = arith.constant dense<0.000000e+00> : vector<8x4xf32>
    %47 = tpu.matmul %44, %46, %cst_67 {dimension_numbers = #tpu.dot_dimension_numbers<[1], [0], [0], [1], [0, 0, 1, 1], [], []>} : vector<8x4xbf16>, vector<4x4xbf16>, vector<8x4xf32> -> vector<8x4xf32>
    %48 = arith.addf %42, %47 : vector<8x4xf32>
    %c0_68 = arith.constant 0 : index
    %c0_69 = arith.constant 0 : index
    %c1_70 = arith.constant 1 : index
    %c0_71 = arith.constant 0 : index
    %49 = vector.load %arg7[%c0_68, %c0_69, %c1_70, %c0_71] : memref<1x1x9x8xbf16, #tpu.memory_space<vmem>>, vector<1x1x8x4xbf16>
    %50 = vector.shape_cast %49 : vector<1x1x8x4xbf16> to vector<8x4xbf16>
    %c2_72 = arith.constant 2 : index
    %c2_73 = arith.constant 2 : index
    %c0_74 = arith.constant 0 : index
    %c0_75 = arith.constant 0 : index
    %51 = vector.load %arg3[%c2_72, %c2_73, %c0_74, %c0_75] : memref<3x3x4x4xbf16, #tpu.memory_space<vmem>>, vector<1x1x4x4xbf16>
    %52 = vector.shape_cast %51 : vector<1x1x4x4xbf16> to vector<4x4xbf16>
    %cst_76 = arith.constant dense<0.000000e+00> : vector<8x4xf32>
    %53 = tpu.matmul %50, %52, %cst_76 {dimension_numbers = #tpu.dot_dimension_numbers<[1], [0], [0], [1], [0, 0, 1, 1], [], []>} : vector<8x4xbf16>, vector<4x4xbf16>, vector<8x4xf32> -> vector<8x4xf32>
    %54 = arith.addf %48, %53 : vector<8x4xf32>
    %c0_77 = arith.constant 0 : index
    %c0_78 = arith.constant 0 : index
    %55 = vector.load %arg4[%c0_77, %c0_78] : memref<1x4xf32, #tpu.memory_space<vmem>>, vector<1x4xf32>
    %56 = vector.broadcast %55 : vector<1x4xf32> to vector<8x4xf32>
    %57 = arith.addf %54, %56 : vector<8x4xf32>
    %c0_79 = arith.constant 0 : index
    %c0_80 = arith.constant 0 : index
    %c0_81 = arith.constant 0 : index
    %c0_82 = arith.constant 0 : index
    %58 = vector.load %arg8[%c0_79, %c0_80, %c0_81, %c0_82] : memref<1x1x8x4xf32, #tpu.memory_space<vmem>>, vector<1x1x8x4xf32>
    %59 = vector.shape_cast %58 : vector<1x1x8x4xf32> to vector<8x4xf32>
    %60 = vector.shape_cast %57 : vector<8x4xf32> to vector<1x1x8x4xf32>
    tpu.vector_store %arg8[%c0_79, %c0_80, %c0_81, %c0_82], %60 {strides = array<i32>} : memref<1x1x8x4xf32, #tpu.memory_space<vmem>>, vector<1x1x8x4xf32>,
    return
  }
  func.func @transform_0(%arg0: i32, %arg1: i32, %arg2: i32) -> (i32, i32, i32, i32) {
    %c0_i32 = arith.constant 0 : i32
    %c0_i32_0 = arith.constant 0 : i32
    %c0_i32_1 = arith.constant 0 : i32
    %c0_i32_2 = arith.constant 0 : i32
    return %c0_i32, %c0_i32_0, %c0_i32_1, %arg2 : i32, i32, i32, i32
  }
  func.func @transform_1(%arg0: i32, %arg1: i32, %arg2: i32) -> (i32, i32) {
    %c0_i32 = arith.constant 0 : i32
    %c0_i32_0 = arith.constant 0 : i32
    return %c0_i32, %arg2 : i32, i32
  }
  func.func @transform_2(%arg0: i32, %arg1: i32, %arg2: i32) -> (i32, i32, i32, i32) {
    %c2_i32 = arith.constant 2 : i32
    %0 = arith.muli %c2_i32, %arg1 : i32
    %c0_i32 = arith.constant 0 : i32
    %1 = arith.addi %0, %c0_i32 : i32
    %c0_i32_0 = arith.constant 0 : i32
    %c0_i32_1 = arith.constant 0 : i32
    %c0_i32_2 = arith.constant 0 : i32
    return %arg0, %1, %c0_i32_0, %c0_i32_1 : i32, i32, i32, i32
  }
  func.func @transform_3(%arg0: i32, %arg1: i32, %arg2: i32) -> (i32, i32, i32, i32) {
    %c2_i32 = arith.constant 2 : i32
    %0 = arith.muli %c2_i32, %arg1 : i32
    %c1_i32 = arith.constant 1 : i32
    %1 = arith.addi %0, %c1_i32 : i32
    %c0_i32 = arith.constant 0 : i32
    %c0_i32_0 = arith.constant 0 : i32
    %c0_i32_1 = arith.constant 0 : i32
    return %arg0, %1, %c0_i32, %c0_i32_0 : i32, i32, i32, i32
  }
  func.func @transform_4(%arg0: i32, %arg1: i32, %arg2: i32) -> (i32, i32, i32, i32) {
    %c2_i32 = arith.constant 2 : i32
    %0 = arith.muli %c2_i32, %arg1 : i32
    %c2_i32_0 = arith.constant 2 : i32
    %1 = arith.addi %0, %c2_i32_0 : i32
    %c0_i32 = arith.constant 0 : i32
    %c0_i32_1 = arith.constant 0 : i32
    %c0_i32_2 = arith.constant 0 : i32
    return %arg0, %1, %c0_i32, %c0_i32_1 : i32, i32, i32, i32
  }
  func.func @transform_5(%arg0: i32, %arg1: i32, %arg2: i32) -> (i32, i32, i32, i32) {
    %c0_i32 = arith.constant 0 : i32
    %c0_i32_0 = arith.constant 0 : i32
    return %arg0, %arg1, %c0_i32, %arg2 : i32, i32, i32, i32
  }
}

</mosaic_0001>

<llo_original>
// kernel: tpu_custom_call.1
$region0: #{tpu_custom_call.1}
  #allocation0 [shape = 'u32[]', space=smem, size = 0x4, offset = 0x4, fixed_abs, tag = 'smem constant byte address 0x4 - core index']
  #allocation1 [shape = 'u32[144,128]{1,0:T(1,128)}', space=vmem, size = 0x12000, scoped, tag = 'internal scratch']
  %s0 = inlined_call_operand.vmem [shape: bf16[3,3,4,4], index: 0, kind: input, shape index: {}]
  %s1 = inlined_call_operand.vmem [shape: f32[1,4], index: 1, kind: input, shape index: {}]
  %s2 = inlined_call_operand.vmem [shape: bf16[2,18,9,8], index: 2, kind: input, shape index: {}]
  %s3 = inlined_call_operand.vmem [shape: bf16[2,18,9,8], index: 3, kind: input, shape index: {}]
  %s4 = inlined_call_operand.vmem [shape: bf16[2,18,9,8], index: 4, kind: input, shape index: {}]
  %s5 = inlined_call_operand.vmem [shape: f32[2,8,8,4], index: 5, kind: output, shape index: {}]
  %s6 = sld [smem:[#allocation0]]
  $region53: #{tpu_custom_call.1} parent=0
    _
  %s8 = ssub.s32 1, %s6
  %s9 = scalar_select 0, %s8, %s6
  loop: start=0, step=1, limit=18
  $region2: #{tpu_custom_call.1} parent=0 // loop_pre_header
    _
  $region3: #{tpu_custom_call.1} parent=0 // loop_header
    %s11 = sphi 0, %s15
    %p12 = scmp.ge.s32.totalorder %s11, 18
    %s18 = sphi 0, %s37
    %s19 = sphi 0, %s33
    %s20 = sphi 0, %s29
    %s21 = sphi 0, %s18
    %s22 = sphi 0, %s19
    %s23 = sphi 0, %s20
    %s24 = sphi 0, %s21
    %s25 = sphi 0, %s22
    %s26 = sphi 0, %s23
    %s40 = sphi 0, %s42
    %s43 = sphi 0, %s40
    %s44 = sphi 0, %s43
    %s60 = sphi 0, %s44
    %s66 = sphi 0, %s68
    %s69 = sphi 0, %s66
    %s70 = sphi 0, %s69
    %s86 = sphi 0, %s70
    %s96 = sphi 0, %s98
    %s99 = sphi 0, %s96
    %s100 = sphi 0, %s99
    %s116 = sphi 0, %s100
    %s128 = sphi 0, %s130
    %s131 = sphi 0, %s128
    %s132 = sphi 0, %s131
    %s148 = sphi 0, %s132
    %s160 = sphi 0, %s162
    %s163 = sphi 0, %s160
    %s164 = sphi 0, %s163
    %s180 = sphi 0, %s164
    %s190 = sphi 0, %s192
    %s193 = sphi 0, %s190
    %s194 = sphi 0, %s193
    %s210 = sphi 0, %s194
  $region4: #{tpu_custom_call.1} parent=0 // loop_header_branch
    %14 = sbr.rel (%p12) target = $region8
  $region5: #{tpu_custom_call.1} parent=0 // loop_body
    %s16 = ssub.s32 %s11, 1
    %s17 = ssub.s32 %s11, 2
    %s27 = sadd.s32 1, %s20
    %p28 = scmp.ge.s32.totalorder %s27, 1
    %s29 = scalar_select %p28, 0, %s27
    %s30 = sadd.s32 1, %s19
    %s31 = scalar_select %p28, %s30, %s19
    %p32 = scmp.ge.s32.totalorder %s31, 8
    %s33 = scalar_select %p32, 0, %s31
    %s34 = sadd.s32 1, %s18
    %s35 = scalar_select %p32, %s34, %s18
    %p36 = scmp.ge.s32.totalorder %s35, 2
    %s37 = scalar_select %p36, 0, %s35
    %s38 = ssub.s32 %s20, %s29
    %p39 = scmp.eq.s32.totalorder %s38, 0
    %s41 = sadd.s32 %s40, 1
    %s42 = scalar_select %p39, %s40, %s41
    %p45 = pneg %p39
    %p46 = scmp.eq.s32.totalorder %s11, 15
    %p47 = por %p45, %p46
    %p48 = scmp.ne.s32.totalorder %s40, %s43
    %p49 = scmp.eq.s32.totalorder %s11, 0
    %p50 = por %p48, %p49
    %p51 = scmp.ne.s32.totalorder %s40, %s43
    %p52 = scmp.eq.s32.totalorder %s16, 15
    %p53 = por %p51, %p52
    %p54 = scmp.ne.s32.totalorder %s43, %s44
    %p55 = scmp.eq.s32.totalorder %s16, 0
    %p56 = por %p54, %p55
    %p57 = scmp.ne.s32.totalorder %s43, %s44
    %p58 = scmp.eq.s32.totalorder %s17, 15
    %p59 = por %p57, %p58
    %p61 = scmp.ne.s32.totalorder %s44, %s60
    %p62 = scmp.eq.s32.totalorder %s17, 0
    %p63 = por %p61, %p62
    %s64 = ssub.s32 %s20, %s29
    %p65 = scmp.eq.s32.totalorder %s64, 0
    %s67 = sadd.s32 %s66, 1
    %s68 = scalar_select %p65, %s66, %s67
    %p71 = pneg %p65
    %p72 = scmp.eq.s32.totalorder %s11, 15
    %p73 = por %p71, %p72
    %p74 = scmp.ne.s32.totalorder %s66, %s69
    %p75 = scmp.eq.s32.totalorder %s11, 0
    %p76 = por %p74, %p75
    %p77 = scmp.ne.s32.totalorder %s66, %s69
    %p78 = scmp.eq.s32.totalorder %s16, 15
    %p79 = por %p77, %p78
    %p80 = scmp.ne.s32.totalorder %s69, %s70
    %p81 = scmp.eq.s32.totalorder %s16, 0
    %p82 = por %p80, %p81
    %p83 = scmp.ne.s32.totalorder %s69, %s70
    %p84 = scmp.eq.s32.totalorder %s17, 15
    %p85 = por %p83, %p84
    %p87 = scmp.ne.s32.totalorder %s70, %s86
    %p88 = scmp.eq.s32.totalorder %s17, 0
    %p89 = por %p87, %p88
    %s90 = smul.u32 %s19, 2
    %s91 = smul.u32 %s33, 2
    %s92 = ssub.s32 %s18, %s37
    %s93 = ssub.s32 %s90, %s91
    %s94 = sor.u32 %s92, %s93
    %p95 = scmp.eq.s32.totalorder %s94, 0
    %s97 = sadd.s32 %s96, 1
    %s98 = scalar_select %p95, %s96, %s97
    %p101 = pneg %p95
    %p102 = scmp.eq.s32.totalorder %s11, 15
    %p103 = por %p101, %p102
    %p104 = scmp.ne.s32.totalorder %s96, %s99
    %p105 = scmp.eq.s32.totalorder %s11, 0
    %p106 = por %p104, %p105
    %p107 = scmp.ne.s32.totalorder %s96, %s99
    %p108 = scmp.eq.s32.totalorder %s16, 15
    %p109 = por %p107, %p108
    %p110 = scmp.ne.s32.totalorder %s99, %s100
    %p111 = scmp.eq.s32.totalorder %s16, 0
    %p112 = por %p110, %p111
    %p113 = scmp.ne.s32.totalorder %s99, %s100
    %p114 = scmp.eq.s32.totalorder %s17, 15
    %p115 = por %p113, %p114
    %p117 = scmp.ne.s32.totalorder %s100, %s116
    %p118 = scmp.eq.s32.totalorder %s17, 0
    %p119 = por %p117, %p118
    %s120 = smul.u32 %s19, 2
    %s121 = sadd.s32 %s120, 1
    %s122 = smul.u32 %s33, 2
    %s123 = sadd.s32 %s122, 1
    %s124 = ssub.s32 %s18, %s37
    %s125 = ssub.s32 %s121, %s123
    %s126 = sor.u32 %s124, %s125
    %p127 = scmp.eq.s32.totalorder %s126, 0
    %s129 = sadd.s32 %s128, 1
    %s130 = scalar_select %p127, %s128, %s129
    %p133 = pneg %p127
    %p134 = scmp.eq.s32.totalorder %s11, 15
    %p135 = por %p133, %p134
    %p136 = scmp.ne.s32.totalorder %s128, %s131
    %p137 = scmp.eq.s32.totalorder %s11, 0
    %p138 = por %p136, %p137
    %p139 = scmp.ne.s32.totalorder %s128, %s131
    %p140 = scmp.eq.s32.totalorder %s16, 15
    %p141 = por %p139, %p140
    %p142 = scmp.ne.s32.totalorder %s131, %s132
    %p143 = scmp.eq.s32.totalorder %s16, 0
    %p144 = por %p142, %p143
    %p145 = scmp.ne.s32.totalorder %s131, %s132
    %p146 = scmp.eq.s32.totalorder %s17, 15
    %p147 = por %p145, %p146
    %p149 = scmp.ne.s32.totalorder %s132, %s148
    %p150 = scmp.eq.s32.totalorder %s17, 0
    %p151 = por %p149, %p150
    %s152 = smul.u32 %s19, 2
    %s153 = sadd.s32 %s152, 2
    %s154 = smul.u32 %s33, 2
    %s155 = sadd.s32 %s154, 2
    %s156 = ssub.s32 %s18, %s37
    %s157 = ssub.s32 %s153, %s155
    %s158 = sor.u32 %s156, %s157
    %p159 = scmp.eq.s32.totalorder %s158, 0
    %s161 = sadd.s32 %s160, 1
    %s162 = scalar_select %p159, %s160, %s161
    %p165 = pneg %p159
    %p166 = scmp.eq.s32.totalorder %s11, 15
    %p167 = por %p165, %p166
    %p168 = scmp.ne.s32.totalorder %s160, %s163
    %p169 = scmp.eq.s32.totalorder %s11, 0
    %p170 = por %p168, %p169
    %p171 = scmp.ne.s32.totalorder %s160, %s163
    %p172 = scmp.eq.s32.totalorder %s16, 15
    %p173 = por %p171, %p172
    %p174 = scmp.ne.s32.totalorder %s163, %s164
    %p175 = scmp.eq.s32.totalorder %s16, 0
    %p176 = por %p174, %p175
    %p177 = scmp.ne.s32.totalorder %s163, %s164
    %p178 = scmp.eq.s32.totalorder %s17, 15
    %p179 = por %p177, %p178
    %p181 = scmp.ne.s32.totalorder %s164, %s180
    %p182 = scmp.eq.s32.totalorder %s17, 0
    %p183 = por %p181, %p182
    %s184 = ssub.s32 %s18, %s37
    %s185 = ssub.s32 %s19, %s33
    %s186 = sor.u32 %s184, %s185
    %s187 = ssub.s32 %s20, %s29
    %s188 = sor.u32 %s186, %s187
    %p189 = scmp.eq.s32.totalorder %s188, 0
    %s191 = sadd.s32 %s190, 1
    %s192 = scalar_select %p189, %s190, %s191
    %p195 = pneg %p189
    %p196 = scmp.eq.s32.totalorder %s11, 15
    %p197 = por %p195, %p196
    %p198 = scmp.ne.s32.totalorder %s190, %s193
    %p199 = scmp.eq.s32.totalorder %s11, 0
    %p200 = por %p198, %p199
    %p201 = scmp.ne.s32.totalorder %s190, %s193
    %p202 = scmp.eq.s32.totalorder %s16, 15
    %p203 = por %p201, %p202
    %p204 = scmp.ne.s32.totalorder %s193, %s194
    %p205 = scmp.eq.s32.totalorder %s16, 0
    %p206 = por %p204, %p205
    %p207 = scmp.ne.s32.totalorder %s193, %s194
    %p208 = scmp.eq.s32.totalorder %s17, 15
    %p209 = por %p207, %p208
    %p211 = scmp.ne.s32.totalorder %s194, %s210
    %p212 = scmp.eq.s32.totalorder %s17, 0
    %p213 = por %p211, %p212
    %p214 = scmp.le.s32.totalorder 1, %s11
    %p215 = scmp.lt.s32.totalorder %s11, 17
    %p216 = pnand %p214, %p215
    %p217 = pneg %p216
    // Predicated region
    $region9: #{tpu_custom_call.1} parent=5 // pred_check
      _
    $region10: #{tpu_custom_call.1} parent=5 // pred_check_branch
      %219 = sbr.rel (%p216) target = $region12
    $region11: #{tpu_custom_call.1} parent=5 // pred_region
      %s220 = ssub.s32 %s11, 1
      // Predicated region
      $region13: #{tpu_custom_call.1} parent=11 // pred_check
        %p221 = pneg %p56
      $region14: #{tpu_custom_call.1} parent=11 // pred_check_branch
        %223 = sbr.rel (%p221) target = $region16
      $region15: #{tpu_custom_call.1} parent=11 // pred_region
        %p224 = scmp.lt.s32.totalorder %s23, 0
        %s225 = scalar_select %p224, %s23, 0
        %s226 = smul.addr %s225, 2
        %s227 = scalar_lea.vmem %s0, %s226
      $region16: #{tpu_custom_call.1} parent=11 // pred_fallthru
        _
      // Predicated region
      $region17: #{tpu_custom_call.1} parent=11 // pred_check
        %p228 = pneg %p82
      $region18: #{tpu_custom_call.1} parent=11 // pred_check_branch
        %230 = sbr.rel (%p228) target = $region20
      $region19: #{tpu_custom_call.1} parent=11 // pred_region
        %p231 = scmp.lt.s32.totalorder %s23, 0
        %s232 = scalar_select %p231, %s23, 0
        %s233 = scalar_lea.vmem %s1, %s232
      $region20: #{tpu_custom_call.1} parent=11 // pred_fallthru
        _
    $region12: #{tpu_custom_call.1} parent=5 // pred_fallthru
      _
    %p234 = scmp.lt.s32.totalorder %s11, 16
    // Predicated region
    $region21: #{tpu_custom_call.1} parent=5 // pred_check
      %p235 = pneg %p234
    $region22: #{tpu_custom_call.1} parent=5 // pred_check_branch
      %237 = sbr.rel (%p235) target = $region24
    $region23: #{tpu_custom_call.1} parent=5 // pred_region
      // Predicated region
      $region25: #{tpu_custom_call.1} parent=23 // pred_check
        %p238 = pneg %p106
      $region26: #{tpu_custom_call.1} parent=23 // pred_check_branch
        %240 = sbr.rel (%p238) target = $region28
      $region27: #{tpu_custom_call.1} parent=23 // pred_region
        %s241 = smul.u32 %s19, 2
        %p242 = scmp.lt.s32.totalorder %s18, 1
        %s243 = scalar_select %p242, %s18, 1
        %p244 = scmp.lt.s32.totalorder %s241, 17
        %s245 = scalar_select %p244, %s241, 17
        %s246 = smul.addr %s245, 2
        %s247 = smul.addr %s243, 36
        %s248 = sadd.s32 %s246, %s247
        %s249 = smul.addr %s248, 4
        %s250 = scalar_lea.vmem %s2, %s249
        %s251 = smul.u32 %s19, 2
      $region28: #{tpu_custom_call.1} parent=23 // pred_fallthru
        _
      // Predicated region
      $region29: #{tpu_custom_call.1} parent=23 // pred_check
        %p252 = pneg %p138
      $region30: #{tpu_custom_call.1} parent=23 // pred_check_branch
        %254 = sbr.rel (%p252) target = $region32
      $region31: #{tpu_custom_call.1} parent=23 // pred_region
        %s255 = smul.u32 %s19, 2
        %s256 = sadd.s32 %s255, 1
        %p257 = scmp.lt.s32.totalorder %s18, 1
        %s258 = scalar_select %p257, %s18, 1
        %p259 = scmp.lt.s32.totalorder %s256, 17
        %s260 = scalar_select %p259, %s256, 17
        %s261 = smul.addr %s260, 2
        %s262 = smul.addr %s258, 36
        %s263 = sadd.s32 %s261, %s262
        %s264 = smul.addr %s263, 4
        %s265 = scalar_lea.vmem %s3, %s264
        %s266 = smul.u32 %s19, 2
        %s267 = sadd.s32 %s266, 1
      $region32: #{tpu_custom_call.1} parent=23 // pred_fallthru
        _
      // Predicated region
      $region33: #{tpu_custom_call.1} parent=23 // pred_check
        %p268 = pneg %p170
      $region34: #{tpu_custom_call.1} parent=23 // pred_check_branch
        %270 = sbr.rel (%p268) target = $region36
      $region35: #{tpu_custom_call.1} parent=23 // pred_region
        %s271 = smul.u32 %s19, 2
        %s272 = sadd.s32 %s271, 2
        %p273 = scmp.lt.s32.totalorder %s18, 1
        %s274 = scalar_select %p273, %s18, 1
        %p275 = scmp.lt.s32.totalorder %s272, 17
        %s276 = scalar_select %p275, %s272, 17
        %s277 = smul.addr %s276, 2
        %s278 = smul.addr %s274, 36
        %s279 = sadd.s32 %s277, %s278
        %s280 = smul.addr %s279, 4
        %s281 = scalar_lea.vmem %s4, %s280
        %s282 = smul.u32 %s19, 2
        %s283 = sadd.s32 %s282, 2
      $region36: #{tpu_custom_call.1} parent=23 // pred_fallthru
        _
    $region24: #{tpu_custom_call.1} parent=5 // pred_fallthru
      _
    %p284 = scmp.le.s32.totalorder 1, %s11
    %p285 = scmp.lt.s32.totalorder %s11, 17
    %p286 = pnand %p284, %p285
    %p287 = pneg %p286
    // Predicated region
    $region37: #{tpu_custom_call.1} parent=5 // pred_check
      _
    $region38: #{tpu_custom_call.1} parent=5 // pred_check_branch
      %289 = sbr.rel (%p286) target = $region40
    $region39: #{tpu_custom_call.1} parent=5 // pred_region
      %s290 = ssub.s32 %s11, 1
      %p291 = scmp.lt.s32.totalorder %s23, 0
      %s292 = scalar_select %p291, %s23, 0
      %s293 = smul.addr %s292, 2
      %s294 = scalar_lea.vmem %s0, %s293
      %p295 = pneg %p56
      %p296 = pneg %p53
      %p297 = scmp.lt.s32.totalorder %s23, 0
      %s298 = scalar_select %p297, %s23, 0
      %s299 = scalar_lea.vmem %s1, %s298
      %p300 = pneg %p82
      %p301 = pneg %p79
      %s302 = smul.u32 %s22, 2
      %p303 = scmp.lt.s32.totalorder %s21, 1
      %s304 = scalar_select %p303, %s21, 1
      %p305 = scmp.lt.s32.totalorder %s302, 17
      %s306 = scalar_select %p305, %s302, 17
      %s307 = smul.addr %s306, 2
      %s308 = smul.addr %s304, 36
      %s309 = sadd.s32 %s307, %s308
      %s310 = smul.addr %s309, 4
      %s311 = scalar_lea.vmem %s2, %s310
      %p312 = pneg %p112
      %p313 = pneg %p109
      %s314 = smul.u32 %s22, 2
      %s315 = sadd.s32 %s314, 1
      %p316 = scmp.lt.s32.totalorder %s21, 1
      %s317 = scalar_select %p316, %s21, 1
      %p318 = scmp.lt.s32.totalorder %s315, 17
      %s319 = scalar_select %p318, %s315, 17
      %s320 = smul.addr %s319, 2
      %s321 = smul.addr %s317, 36
      %s322 = sadd.s32 %s320, %s321
      %s323 = smul.addr %s322, 4
      %s324 = scalar_lea.vmem %s3, %s323
      %p325 = pneg %p144
      %p326 = pneg %p141
      %s327 = smul.u32 %s22, 2
      %s328 = sadd.s32 %s327, 2
      %p329 = scmp.lt.s32.totalorder %s21, 1
      %s330 = scalar_select %p329, %s21, 1
      %p331 = scmp.lt.s32.totalorder %s328, 17
      %s332 = scalar_select %p331, %s328, 17
      %s333 = smul.addr %s332, 2
      %s334 = smul.addr %s330, 36
      %s335 = sadd.s32 %s333, %s334
      %s336 = smul.addr %s335, 4
      %s337 = scalar_lea.vmem %s4, %s336
      %p338 = pneg %p176
      %p339 = pneg %p173
      %p340 = pneg %p206
      %p341 = pneg %p203
      %p342 = scmp.lt.s32.totalorder %s21, 1
      %s343 = scalar_select %p342, %s21, 1
      %p344 = scmp.lt.s32.totalorder %s22, 7
      %s345 = scalar_select %p344, %s22, 7
      %p346 = scmp.lt.s32.totalorder %s23, 0
      %s347 = scalar_select %p346, %s23, 0
      %s348 = sadd.s32 %s347, %s345
      %s349 = smul.addr %s343, 8
      %s350 = sadd.s32 %s348, %s349
      %s351 = smul.addr %s350, 8
      %s352 = scalar_lea.vmem %s5, %s351
      %p353 = scmp.lt.s32.totalorder %s23, 0
      %s354 = scalar_select %p353, %s23, 0
      %s355 = smul.addr %s354, 2
      %s356 = scalar_lea.vmem %s0, %s355
      %p357 = scmp.lt.s32.totalorder %s23, 0
      %s358 = scalar_select %p357, %s23, 0
      %s359 = scalar_lea.vmem %s1, %s358
      %s360 = smul.u32 %s22, 2
      %p361 = scmp.lt.s32.totalorder %s21, 1
      %s362 = scalar_select %p361, %s21, 1
      %p363 = scmp.lt.s32.totalorder %s360, 17
      %s364 = scalar_select %p363, %s360, 17
      %s365 = smul.addr %s364, 2
      %s366 = smul.addr %s362, 36
      %s367 = sadd.s32 %s365, %s366
      %s368 = smul.addr %s367, 4
      %s369 = scalar_lea.vmem %s2, %s368
      %s370 = smul.u32 %s22, 2
      %s371 = smul.u32 %s22, 2
      %s372 = sadd.s32 %s371, 1
      %p373 = scmp.lt.s32.totalorder %s21, 1
      %s374 = scalar_select %p373, %s21, 1
      %p375 = scmp.lt.s32.totalorder %s372, 17
      %s376 = scalar_select %p375, %s372, 17
      %s377 = smul.addr %s376, 2
      %s378 = smul.addr %s374, 36
      %s379 = sadd.s32 %s377, %s378
      %s380 = smul.addr %s379, 4
      %s381 = scalar_lea.vmem %s3, %s380
      %s382 = smul.u32 %s22, 2
      %s383 = sadd.s32 %s382, 1
      %s384 = smul.u32 %s22, 2
      %s385 = sadd.s32 %s384, 2
      %p386 = scmp.lt.s32.totalorder %s21, 1
      %s387 = scalar_select %p386, %s21, 1
      %p388 = scmp.lt.s32.totalorder %s385, 17
      %s389 = scalar_select %p388, %s385, 17
      %s390 = smul.addr %s389, 2
      %s391 = smul.addr %s387, 36
      %s392 = sadd.s32 %s390, %s391
      %s393 = smul.addr %s392, 4
      %s394 = scalar_lea.vmem %s4, %s393
      %s395 = smul.u32 %s22, 2
      %s396 = sadd.s32 %s395, 2
      %p397 = scmp.lt.s32.totalorder %s21, 1
      %s398 = scalar_select %p397, %s21, 1
      %p399 = scmp.lt.s32.totalorder %s22, 7
      %s400 = scalar_select %p399, %s22, 7
      %p401 = scmp.lt.s32.totalorder %s23, 0
      %s402 = scalar_select %p401, %s23, 0
      %s403 = sadd.s32 %s402, %s400
      %s404 = smul.addr %s398, 8
      %s405 = sadd.s32 %s403, %s404
      %s406 = smul.addr %s405, 8
      %s407 = scalar_lea.vmem %s5, %s406
      %v409 = vld [vmem:[%s369] sm:$0xf]
      %v410 = vld [vmem:[%s356] sm:$0x3]
      %s411 = scalar_lea.vmem %s356, 2
      %v412 = vld [vmem:[%s411] sm:$0x3]
      %v414 = vunpack.c.l.b16 %v409
      %v415 = vpack.c.b16 %v414, %v414
      %416 = vrot.lane.b32.xlu0 %v415, 124
      %v417 = vpop.permute.xlu0 %416
      %vm418 = vcmask 31744
      %v420 = vsel %vm418, %v417, 0
      %vm422 = vcmask 1041408
      %v424 = vsel %vm422, %v412, 0
      %426 = vmatprep.subr.bf16.mxu0 0
      %427 = vmatpush1.bf16.msra.mxu0 %v424
      %428 = vmatprep.subr.bf16.mxu0 0
      %429 = vmatpush1.bf16.msra.mxu0 0
      %430 = vmatprep.subr.bf16.mxu0 0
      %431 = vmatpush1.bf16.msra.mxu0 0
      %432 = vmatprep.subr.bf16.mxu0 0
      %433 = vmatpush1.bf16.msra.mxu0 0
      %434 = vmatprep.subr.bf16.mxu0 0
      %435 = vmatpush1.bf16.msra.mxu0 0
      %436 = vmatprep.subr.bf16.mxu0 0
      %437 = vmatpush1.bf16.msra.mxu0 0
      %438 = vmatprep.subr.bf16.mxu0 0
      %439 = vmatpush1.bf16.msra.mxu0 0
      %440 = vmatprep.subr.bf16.mxu0 0
      %441 = vmatpush1.bf16.msra.mxu0 0
      %442 = vmatprep.subr.bf16.mxu0 0
      %443 = vmatpush1.bf16.msra.mxu0 0
      %444 = vmatprep.subr.bf16.mxu0 0
      %445 = vmatpush1.bf16.msra.mxu0 0
      %446 = vmatprep.subr.bf16.mxu0 0
      %447 = vmatpush1.bf16.msra.mxu0 0
      %448 = vmatprep.subr.bf16.mxu0 0
      %449 = vmatpush1.bf16.msra.mxu0 0
      %450 = vmatprep.subr.bf16.mxu0 0
      %451 = vmatpush1.bf16.msra.mxu0 0
      %452 = vmatprep.subr.bf16.mxu0 0
      %453 = vmatpush1.bf16.msra.mxu0 0
      %454 = vmatprep.subr.bf16.mxu0 0
      %455 = vmatpush1.bf16.msra.mxu0 0
      %456 = vmatprep.subr.bf16.mxu0 0
      %457 = vmatpush1.bf16.msra.mxu0 0
      %458 = vmatprep.mubr.bf16.mxu0 0
      %459 = vmatmul.mubr.bf16.gmra.mrb[0].mxu0 %v420
      %v460 = vpop.f32.mrb[0].mxu0
      %v461 = vadd.f32 0.0, %v460
      %v462 = vpop.f32.mrb[0].mxu0
      %v463 = vpop.f32.mrb[0].mxu0
      %v464 = vpop.f32.mrb[0].mxu0
      %465 = vdwg.mxu0
      %v467 = vsel %vm418, %v409, 0
      %v470 = vsel %vm422, %v410, 0
      %472 = vmatprep.subr.bf16.mxu0 0
      %473 = vmatpush1.bf16.msra.mxu0 %v470
      %474 = vmatprep.subr.bf16.mxu0 0
      %475 = vmatpush1.bf16.msra.mxu0 0
      %476 = vmatprep.subr.bf16.mxu0 0
      %477 = vmatpush1.bf16.msra.mxu0 0
      %478 = vmatprep.subr.bf16.mxu0 0
      %479 = vmatpush1.bf16.msra.mxu0 0
      %480 = vmatprep.subr.bf16.mxu0 0
      %481 = vmatpush1.bf16.msra.mxu0 0
      %482 = vmatprep.subr.bf16.mxu0 0
      %483 = vmatpush1.bf16.msra.mxu0 0
      %484 = vmatprep.subr.bf16.mxu0 0
      %485 = vmatpush1.bf16.msra.mxu0 0
      %486 = vmatprep.subr.bf16.mxu0 0
      %487 = vmatpush1.bf16.msra.mxu0 0
      %488 = vmatprep.subr.bf16.mxu0 0
      %489 = vmatpush1.bf16.msra.mxu0 0
      %490 = vmatprep.subr.bf16.mxu0 0
      %491 = vmatpush1.bf16.msra.mxu0 0
      %492 = vmatprep.subr.bf16.mxu0 0
      %493 = vmatpush1.bf16.msra.mxu0 0
      %494 = vmatprep.subr.bf16.mxu0 0
      %495 = vmatpush1.bf16.msra.mxu0 0
      %496 = vmatprep.subr.bf16.mxu0 0
      %497 = vmatpush1.bf16.msra.mxu0 0
      %498 = vmatprep.subr.bf16.mxu0 0
      %499 = vmatpush1.bf16.msra.mxu0 0
      %500 = vmatprep.subr.bf16.mxu0 0
      %501 = vmatpush1.bf16.msra.mxu0 0
      %502 = vmatprep.subr.bf16.mxu0 0
      %503 = vmatpush1.bf16.msra.mxu0 0
      %504 = vmatprep.mubr.bf16.mxu0 0
      %505 = vmatmul.mubr.bf16.gmra.mrb[0].mxu0 %v467
      %v506 = vpop.f32.mrb[0].mxu0
      %v507 = vadd.f32 %v461, %v506
      %v508 = vpop.f32.mrb[0].mxu0
      %v509 = vpop.f32.mrb[0].mxu0
      %v510 = vpop.f32.mrb[0].mxu0
      %511 = vdwg.mxu0
      %v512 = vld [vmem:[%s369] sm:$0xf]
      %v513 = vld [vmem:[%s369 + $0x4] sm:$0x1]
      %s514 = scalar_lea.vmem %s356, 4
      %v515 = vld [vmem:[%s514] sm:$0x3]
      %v518 = vunpack.c.l.b16 %v512
      %v519 = vunpack.c.l.b16 %v513
      %v520 = vpack.c.b16 %v519, %v518
      %v522 = vshrl.u32 %v520, 16
      %v524 = vshll.u32 %v520, 16
      %v526 = vrot.slane %v524, 1
      %v527 = vor.u32 %v522, %v526
      %v529 = vsel %vm418, %v527, 0
      %v532 = vsel %vm422, %v515, 0
      %534 = vmatprep.subr.bf16.mxu0 0
      %535 = vmatpush1.bf16.msra.mxu0 %v532
      %536 = vmatprep.subr.bf16.mxu0 0
      %537 = vmatpush1.bf16.msra.mxu0 0
      %538 = vmatprep.subr.bf16.mxu0 0
      %539 = vmatpush1.bf16.msra.mxu0 0
      %540 = vmatprep.subr.bf16.mxu0 0
      %541 = vmatpush1.bf16.msra.mxu0 0
      %542 = vmatprep.subr.bf16.mxu0 0
      %543 = vmatpush1.bf16.msra.mxu0 0
      %544 = vmatprep.subr.bf16.mxu0 0
      %545 = vmatpush1.bf16.msra.mxu0 0
      %546 = vmatprep.subr.bf16.mxu0 0
      %547 = vmatpush1.bf16.msra.mxu0 0
      %548 = vmatprep.subr.bf16.mxu0 0
      %549 = vmatpush1.bf16.msra.mxu0 0
      %550 = vmatprep.subr.bf16.mxu0 0
      %551 = vmatpush1.bf16.msra.mxu0 0
      %552 = vmatprep.subr.bf16.mxu0 0
      %553 = vmatpush1.bf16.msra.mxu0 0
      %554 = vmatprep.subr.bf16.mxu0 0
      %555 = vmatpush1.bf16.msra.mxu0 0
      %556 = vmatprep.subr.bf16.mxu0 0
      %557 = vmatpush1.bf16.msra.mxu0 0
      %558 = vmatprep.subr.bf16.mxu0 0
      %559 = vmatpush1.bf16.msra.mxu0 0
      %560 = vmatprep.subr.bf16.mxu0 0
      %561 = vmatpush1.bf16.msra.mxu0 0
      %562 = vmatprep.subr.bf16.mxu0 0
      %563 = vmatpush1.bf16.msra.mxu0 0
      %564 = vmatprep.subr.bf16.mxu0 0
      %565 = vmatpush1.bf16.msra.mxu0 0
      %566 = vmatprep.mubr.bf16.mxu0 0
      %567 = vmatmul.mubr.bf16.gmra.mrb[0].mxu0 %v529
      %v568 = vpop.f32.mrb[0].mxu0
      %v569 = vadd.f32 0.0, %v568
      %v570 = vpop.f32.mrb[0].mxu0
      %v571 = vpop.f32.mrb[0].mxu0
      %v572 = vpop.f32.mrb[0].mxu0
      %573 = vdwg.mxu0
      %v574 = vadd.f32 %v507, %v569
      %v575 = vld [vmem:[%s381] sm:$0xf]
      %s576 = scalar_lea.vmem %s356, 6
      %v577 = vld [vmem:[%s576] sm:$0x3]
      %v579 = vsel %vm418, %v575, 0
      %v582 = vsel %vm422, %v577, 0
      %584 = vmatprep.subr.bf16.mxu0 0
      %585 = vmatpush1.bf16.msra.mxu0 %v582
      %586 = vmatprep.subr.bf16.mxu0 0
      %587 = vmatpush1.bf16.msra.mxu0 0
      %588 = vmatprep.subr.bf16.mxu0 0
      %589 = vmatpush1.bf16.msra.mxu0 0
      %590 = vmatprep.subr.bf16.mxu0 0
      %591 = vmatpush1.bf16.msra.mxu0 0
      %592 = vmatprep.subr.bf16.mxu0 0
      %593 = vmatpush1.bf16.msra.mxu0 0
      %594 = vmatprep.subr.bf16.mxu0 0
      %595 = vmatpush1.bf16.msra.mxu0 0
      %596 = vmatprep.subr.bf16.mxu0 0
      %597 = vmatpush1.bf16.msra.mxu0 0
      %598 = vmatprep.subr.bf16.mxu0 0
      %599 = vmatpush1.bf16.msra.mxu0 0
      %600 = vmatprep.subr.bf16.mxu0 0
      %601 = vmatpush1.bf16.msra.mxu0 0
      %602 = vmatprep.subr.bf16.mxu0 0
      %603 = vmatpush1.bf16.msra.mxu0 0
      %604 = vmatprep.subr.bf16.mxu0 0
      %605 = vmatpush1.bf16.msra.mxu0 0
      %606 = vmatprep.subr.bf16.mxu0 0
      %607 = vmatpush1.bf16.msra.mxu0 0
      %608 = vmatprep.subr.bf16.mxu0 0
      %609 = vmatpush1.bf16.msra.mxu0 0
      %610 = vmatprep.subr.bf16.mxu0 0
      %611 = vmatpush1.bf16.msra.mxu0 0
      %612 = vmatprep.subr.bf16.mxu0 0
      %613 = vmatpush1.bf16.msra.mxu0 0
      %614 = vmatprep.subr.bf16.mxu0 0
      %615 = vmatpush1.bf16.msra.mxu0 0
      %616 = vmatprep.mubr.bf16.mxu0 0
      %617 = vmatmul.mubr.bf16.gmra.mrb[0].mxu0 %v579
      %v618 = vpop.f32.mrb[0].mxu0
      %v619 = vadd.f32 0.0, %v618
      %v620 = vpop.f32.mrb[0].mxu0
      %v621 = vpop.f32.mrb[0].mxu0
      %v622 = vpop.f32.mrb[0].mxu0
      %623 = vdwg.mxu0
      %v624 = vadd.f32 %v574, %v619
      %s625 = scalar_lea.vmem %s356, 8
      %v626 = vld [vmem:[%s625] sm:$0x3]
      %v628 = vunpack.c.l.b16 %v575
      %v629 = vpack.c.b16 %v628, %v628
      %630 = vrot.lane.b32.xlu0 %v629, 124
      %v631 = vpop.permute.xlu0 %630
      %v633 = vsel %vm418, %v631, 0
      %v636 = vsel %vm422, %v626, 0
      %638 = vmatprep.subr.bf16.mxu0 0
      %639 = vmatpush1.bf16.msra.mxu0 %v636
      %640 = vmatprep.subr.bf16.mxu0 0
      %641 = vmatpush1.bf16.msra.mxu0 0
      %642 = vmatprep.subr.bf16.mxu0 0
      %643 = vmatpush1.bf16.msra.mxu0 0
      %644 = vmatprep.subr.bf16.mxu0 0
      %645 = vmatpush1.bf16.msra.mxu0 0
      %646 = vmatprep.subr.bf16.mxu0 0
      %647 = vmatpush1.bf16.msra.mxu0 0
      %648 = vmatprep.subr.bf16.mxu0 0
      %649 = vmatpush1.bf16.msra.mxu0 0
      %650 = vmatprep.subr.bf16.mxu0 0
      %651 = vmatpush1.bf16.msra.mxu0 0
      %652 = vmatprep.subr.bf16.mxu0 0
      %653 = vmatpush1.bf16.msra.mxu0 0
      %654 = vmatprep.subr.bf16.mxu0 0
      %655 = vmatpush1.bf16.msra.mxu0 0
      %656 = vmatprep.subr.bf16.mxu0 0
      %657 = vmatpush1.bf16.msra.mxu0 0
      %658 = vmatprep.subr.bf16.mxu0 0
      %659 = vmatpush1.bf16.msra.mxu0 0
      %660 = vmatprep.subr.bf16.mxu0 0
      %661 = vmatpush1.bf16.msra.mxu0 0
      %662 = vmatprep.subr.bf16.mxu0 0
      %663 = vmatpush1.bf16.msra.mxu0 0
      %664 = vmatprep.subr.bf16.mxu0 0
      %665 = vmatpush1.bf16.msra.mxu0 0
      %666 = vmatprep.subr.bf16.mxu0 0
      %667 = vmatpush1.bf16.msra.mxu0 0
      %668 = vmatprep.subr.bf16.mxu0 0
      %669 = vmatpush1.bf16.msra.mxu0 0
      %670 = vmatprep.mubr.bf16.mxu0 0
      %671 = vmatmul.mubr.bf16.gmra.mrb[0].mxu0 %v633
      %v672 = vpop.f32.mrb[0].mxu0
      %v673 = vadd.f32 0.0, %v672
      %v674 = vpop.f32.mrb[0].mxu0
      %v675 = vpop.f32.mrb[0].mxu0
      %v676 = vpop.f32.mrb[0].mxu0
      %677 = vdwg.mxu0
      %v678 = vadd.f32 %v624, %v673
      %v679 = vld [vmem:[%s381] sm:$0xf]
      %v680 = vld [vmem:[%s381 + $0x4] sm:$0x1]
      %s681 = scalar_lea.vmem %s356, 10
      %v682 = vld [vmem:[%s681] sm:$0x3]
      %v685 = vunpack.c.l.b16 %v679
      %v686 = vunpack.c.l.b16 %v680
      %v687 = vpack.c.b16 %v686, %v685
      %v689 = vshrl.u32 %v687, 16
      %v691 = vshll.u32 %v687, 16
      %v693 = vrot.slane %v691, 1
      %v694 = vor.u32 %v689, %v693
      %v696 = vsel %vm418, %v694, 0
      %v699 = vsel %vm422, %v682, 0
      %701 = vmatprep.subr.bf16.mxu0 0
      %702 = vmatpush1.bf16.msra.mxu0 %v699
      %703 = vmatprep.subr.bf16.mxu0 0
      %704 = vmatpush1.bf16.msra.mxu0 0
      %705 = vmatprep.subr.bf16.mxu0 0
      %706 = vmatpush1.bf16.msra.mxu0 0
      %707 = vmatprep.subr.bf16.mxu0 0
      %708 = vmatpush1.bf16.msra.mxu0 0
      %709 = vmatprep.subr.bf16.mxu0 0
      %710 = vmatpush1.bf16.msra.mxu0 0
      %711 = vmatprep.subr.bf16.mxu0 0
      %712 = vmatpush1.bf16.msra.mxu0 0
      %713 = vmatprep.subr.bf16.mxu0 0
      %714 = vmatpush1.bf16.msra.mxu0 0
      %715 = vmatprep.subr.bf16.mxu0 0
      %716 = vmatpush1.bf16.msra.mxu0 0
      %717 = vmatprep.subr.bf16.mxu0 0
      %718 = vmatpush1.bf16.msra.mxu0 0
      %719 = vmatprep.subr.bf16.mxu0 0
      %720 = vmatpush1.bf16.msra.mxu0 0
      %721 = vmatprep.subr.bf16.mxu0 0
      %722 = vmatpush1.bf16.msra.mxu0 0
      %723 = vmatprep.subr.bf16.mxu0 0
      %724 = vmatpush1.bf16.msra.mxu0 0
      %725 = vmatprep.subr.bf16.mxu0 0
      %726 = vmatpush1.bf16.msra.mxu0 0
      %727 = vmatprep.subr.bf16.mxu0 0
      %728 = vmatpush1.bf16.msra.mxu0 0
      %729 = vmatprep.subr.bf16.mxu0 0
      %730 = vmatpush1.bf16.msra.mxu0 0
      %731 = vmatprep.subr.bf16.mxu0 0
      %732 = vmatpush1.bf16.msra.mxu0 0
      %733 = vmatprep.mubr.bf16.mxu0 0
      %734 = vmatmul.mubr.bf16.gmra.mrb[0].mxu0 %v696
      %v735 = vpop.f32.mrb[0].mxu0
      %v736 = vadd.f32 0.0, %v735
      %v737 = vpop.f32.mrb[0].mxu0
      %v738 = vpop.f32.mrb[0].mxu0
      %v739 = vpop.f32.mrb[0].mxu0
      %740 = vdwg.mxu0
      %v741 = vadd.f32 %v678, %v736
      %v742 = vld [vmem:[%s394] sm:$0xf]
      %s743 = scalar_lea.vmem %s356, 12
      %v744 = vld [vmem:[%s743] sm:$0x3]
      %v746 = vsel %vm418, %v742, 0
      %v749 = vsel %vm422, %v744, 0
      %751 = vmatprep.subr.bf16.mxu0 0
      %752 = vmatpush1.bf16.msra.mxu0 %v749
      %753 = vmatprep.subr.bf16.mxu0 0
      %754 = vmatpush1.bf16.msra.mxu0 0
      %755 = vmatprep.subr.bf16.mxu0 0
      %756 = vmatpush1.bf16.msra.mxu0 0
      %757 = vmatprep.subr.bf16.mxu0 0
      %758 = vmatpush1.bf16.msra.mxu0 0
      %759 = vmatprep.subr.bf16.mxu0 0
      %760 = vmatpush1.bf16.msra.mxu0 0
      %761 = vmatprep.subr.bf16.mxu0 0
      %762 = vmatpush1.bf16.msra.mxu0 0
      %763 = vmatprep.subr.bf16.mxu0 0
      %764 = vmatpush1.bf16.msra.mxu0 0
      %765 = vmatprep.subr.bf16.mxu0 0
      %766 = vmatpush1.bf16.msra.mxu0 0
      %767 = vmatprep.subr.bf16.mxu0 0
      %768 = vmatpush1.bf16.msra.mxu0 0
      %769 = vmatprep.subr.bf16.mxu0 0
      %770 = vmatpush1.bf16.msra.mxu0 0
      %771 = vmatprep.subr.bf16.mxu0 0
      %772 = vmatpush1.bf16.msra.mxu0 0
      %773 = vmatprep.subr.bf16.mxu0 0
      %774 = vmatpush1.bf16.msra.mxu0 0
      %775 = vmatprep.subr.bf16.mxu0 0
      %776 = vmatpush1.bf16.msra.mxu0 0
      %777 = vmatprep.subr.bf16.mxu0 0
      %778 = vmatpush1.bf16.msra.mxu0 0
      %779 = vmatprep.subr.bf16.mxu0 0
      %780 = vmatpush1.bf16.msra.mxu0 0
      %781 = vmatprep.subr.bf16.mxu0 0
      %782 = vmatpush1.bf16.msra.mxu0 0
      %783 = vmatprep.mubr.bf16.mxu0 0
      %784 = vmatmul.mubr.bf16.gmra.mrb[0].mxu0 %v746
      %v785 = vpop.f32.mrb[0].mxu0
      %v786 = vadd.f32 0.0, %v785
      %v787 = vpop.f32.mrb[0].mxu0
      %v788 = vpop.f32.mrb[0].mxu0
      %v789 = vpop.f32.mrb[0].mxu0
      %790 = vdwg.mxu0
      %v791 = vadd.f32 %v741, %v786
      %s792 = scalar_lea.vmem %s356, 14
      %v793 = vld [vmem:[%s792] sm:$0x3]
      %v795 = vunpack.c.l.b16 %v742
      %v796 = vpack.c.b16 %v795, %v795
      %797 = vrot.lane.b32.xlu0 %v796, 124
      %v798 = vpop.permute.xlu0 %797
      %v800 = vsel %vm418, %v798, 0
      %v803 = vsel %vm422, %v793, 0
      %805 = vmatprep.subr.bf16.mxu0 0
      %806 = vmatpush1.bf16.msra.mxu0 %v803
      %807 = vmatprep.subr.bf16.mxu0 0
      %808 = vmatpush1.bf16.msra.mxu0 0
      %809 = vmatprep.subr.bf16.mxu0 0
      %810 = vmatpush1.bf16.msra.mxu0 0
      %811 = vmatprep.subr.bf16.mxu0 0
      %812 = vmatpush1.bf16.msra.mxu0 0
      %813 = vmatprep.subr.bf16.mxu0 0
      %814 = vmatpush1.bf16.msra.mxu0 0
      %815 = vmatprep.subr.bf16.mxu0 0
      %816 = vmatpush1.bf16.msra.mxu0 0
      %817 = vmatprep.subr.bf16.mxu0 0
      %818 = vmatpush1.bf16.msra.mxu0 0
      %819 = vmatprep.subr.bf16.mxu0 0
      %820 = vmatpush1.bf16.msra.mxu0 0
      %821 = vmatprep.subr.bf16.mxu0 0
      %822 = vmatpush1.bf16.msra.mxu0 0
      %823 = vmatprep.subr.bf16.mxu0 0
      %824 = vmatpush1.bf16.msra.mxu0 0
      %825 = vmatprep.subr.bf16.mxu0 0
      %826 = vmatpush1.bf16.msra.mxu0 0
      %827 = vmatprep.subr.bf16.mxu0 0
      %828 = vmatpush1.bf16.msra.mxu0 0
      %829 = vmatprep.subr.bf16.mxu0 0
      %830 = vmatpush1.bf16.msra.mxu0 0
      %831 = vmatprep.subr.bf16.mxu0 0
      %832 = vmatpush1.bf16.msra.mxu0 0
      %833 = vmatprep.subr.bf16.mxu0 0
      %834 = vmatpush1.bf16.msra.mxu0 0
      %835 = vmatprep.subr.bf16.mxu0 0
      %836 = vmatpush1.bf16.msra.mxu0 0
      %837 = vmatprep.mubr.bf16.mxu0 0
      %838 = vmatmul.mubr.bf16.gmra.mrb[0].mxu0 %v800
      %v839 = vpop.f32.mrb[0].mxu0
      %v840 = vadd.f32 0.0, %v839
      %v841 = vpop.f32.mrb[0].mxu0
      %v842 = vpop.f32.mrb[0].mxu0
      %v843 = vpop.f32.mrb[0].mxu0
      %844 = vdwg.mxu0
      %v845 = vadd.f32 %v791, %v840
      %v846 = vld [vmem:[%s394] sm:$0xf]
      %v847 = vld [vmem:[%s394 + $0x4] sm:$0x1]
      %s848 = scalar_lea.vmem %s356, 16
      %v849 = vld [vmem:[%s848] sm:$0x3]
      %v852 = vunpack.c.l.b16 %v846
      %v853 = vunpack.c.l.b16 %v847
      %v854 = vpack.c.b16 %v853, %v852
      %v856 = vshrl.u32 %v854, 16
      %v858 = vshll.u32 %v854, 16
      %v860 = vrot.slane %v858, 1
      %v861 = vor.u32 %v856, %v860
      %v863 = vsel %vm418, %v861, 0
      %v866 = vsel %vm422, %v849, 0
      %868 = vmatprep.subr.bf16.mxu0 0
      %869 = vmatpush1.bf16.msra.mxu0 %v866
      %870 = vmatprep.subr.bf16.mxu0 0
      %871 = vmatpush1.bf16.msra.mxu0 0
      %872 = vmatprep.subr.bf16.mxu0 0
      %873 = vmatpush1.bf16.msra.mxu0 0
      %874 = vmatprep.subr.bf16.mxu0 0
      %875 = vmatpush1.bf16.msra.mxu0 0
      %876 = vmatprep.subr.bf16.mxu0 0
      %877 = vmatpush1.bf16.msra.mxu0 0
      %878 = vmatprep.subr.bf16.mxu0 0
      %879 = vmatpush1.bf16.msra.mxu0 0
      %880 = vmatprep.subr.bf16.mxu0 0
      %881 = vmatpush1.bf16.msra.mxu0 0
      %882 = vmatprep.subr.bf16.mxu0 0
      %883 = vmatpush1.bf16.msra.mxu0 0
      %884 = vmatprep.subr.bf16.mxu0 0
      %885 = vmatpush1.bf16.msra.mxu0 0
      %886 = vmatprep.subr.bf16.mxu0 0
      %887 = vmatpush1.bf16.msra.mxu0 0
      %888 = vmatprep.subr.bf16.mxu0 0
      %889 = vmatpush1.bf16.msra.mxu0 0
      %890 = vmatprep.subr.bf16.mxu0 0
      %891 = vmatpush1.bf16.msra.mxu0 0
      %892 = vmatprep.subr.bf16.mxu0 0
      %893 = vmatpush1.bf16.msra.mxu0 0
      %894 = vmatprep.subr.bf16.mxu0 0
      %895 = vmatpush1.bf16.msra.mxu0 0
      %896 = vmatprep.subr.bf16.mxu0 0
      %897 = vmatpush1.bf16.msra.mxu0 0
      %898 = vmatprep.subr.bf16.mxu0 0
      %899 = vmatpush1.bf16.msra.mxu0 0
      %900 = vmatprep.mubr.bf16.mxu0 0
      %901 = vmatmul.mubr.bf16.gmra.mrb[0].mxu0 %v863
      %v902 = vpop.f32.mrb[0].mxu0
      %v903 = vadd.f32 0.0, %v902
      %v904 = vpop.f32.mrb[0].mxu0
      %v905 = vpop.f32.mrb[0].mxu0
      %v906 = vpop.f32.mrb[0].mxu0
      %907 = vdwg.mxu0
      %v908 = vadd.f32 %v845, %v903
      %v909 = vld [vmem:[%s359] sm:$0x1]
      %v911 = vlaneseq
      %v912 = vshrl.u32 %v911, 7
      %v913 = vsub.s32 0, %v912
      %v914 = vrot.slane %v909, %v913
      %v916 = vadd.f32 %v908, %v914
      %917 = vst.msk [vmem:[%s407] sm:$0xff] %vm418, %v916
      %p918 = scmp.lt.s32.totalorder %s21, 1
      %s919 = scalar_select %p918, %s21, 1
      %p920 = scmp.lt.s32.totalorder %s22, 7
      %s921 = scalar_select %p920, %s22, 7
      %p922 = scmp.lt.s32.totalorder %s23, 0
      %s923 = scalar_select %p922, %s23, 0
      %s924 = sadd.s32 %s923, %s921
      %s925 = smul.addr %s919, 8
      %s926 = sadd.s32 %s924, %s925
      %s927 = smul.addr %s926, 8
      %s928 = scalar_lea.vmem %s5, %s927
      // Predicated region
      $region41: #{tpu_custom_call.1} parent=39 // pred_check
        %p929 = pneg %p203
      $region42: #{tpu_custom_call.1} parent=39 // pred_check_branch
        %931 = sbr.rel (%p929) target = $region44
      $region43: #{tpu_custom_call.1} parent=39 // pred_region
        _
      $region44: #{tpu_custom_call.1} parent=39 // pred_fallthru
        _
    $region40: #{tpu_custom_call.1} parent=5 // pred_fallthru
      _
    %p932 = scmp.le.s32.totalorder 2, %s11
    // Predicated region
    $region45: #{tpu_custom_call.1} parent=5 // pred_check
      %p933 = pneg %p932
    $region46: #{tpu_custom_call.1} parent=5 // pred_check_branch
      %935 = sbr.rel (%p933) target = $region48
    $region47: #{tpu_custom_call.1} parent=5 // pred_region
      %s936 = ssub.s32 %s11, 2
      // Predicated region
      $region49: #{tpu_custom_call.1} parent=47 // pred_check
        %p937 = pneg %p209
      $region50: #{tpu_custom_call.1} parent=47 // pred_check_branch
        %939 = sbr.rel (%p937) target = $region52
      $region51: #{tpu_custom_call.1} parent=47 // pred_region
        %p940 = scmp.lt.s32.totalorder %s24, 1
        %s941 = scalar_select %p940, %s24, 1
        %p942 = scmp.lt.s32.totalorder %s25, 7
        %s943 = scalar_select %p942, %s25, 7
        %p944 = scmp.lt.s32.totalorder %s26, 0
        %s945 = scalar_select %p944, %s26, 0
        %s946 = sadd.s32 %s945, %s943
        %s947 = smul.addr %s941, 8
        %s948 = sadd.s32 %s946, %s947
        %s949 = smul.addr %s948, 8
        %s950 = scalar_lea.vmem %s5, %s949
      $region52: #{tpu_custom_call.1} parent=47 // pred_fallthru
        _
    $region48: #{tpu_custom_call.1} parent=5 // pred_fallthru
      _
  $region6: #{tpu_custom_call.1} parent=0 // loop_footer
    %s15 = sadd.s32 1, %s11
  $region7: #{tpu_custom_call.1} parent=0 // loop_footer_branch
    %10 = sbr.rel target = $region3
  $region8: #{tpu_custom_call.1} parent=0 // loop_exit
    _

</llo_original>
